<compile_context>
chip_gen: v7x
topology: tpu7x:2x2x1
jax: 0.10.0
libtpu: 0.0.40
codegen_flags: <defaults>
</compile_context>

<pallas_src>
import jax
import jax.numpy as jnp
from jax.experimental import pallas as pl
from jax.experimental.pallas import tpu as pltpu


def _fs2_loss_kernel(
    mel_pred_ref,   # (tile, M)   mel dtype (f32 or bf16)
    postnet_ref,    # (tile, M)   mel dtype
    mel_tgt_ref,    # (tile, M)   mel dtype
    mask_ref,       # (tile, 1)   f32, 1 = valid frame (zero-padded past N)
    small_ref,      # (7, B, L)   f32: [pitch_p, pitch_t, en_p, en_t, ldur_p, dur_t, src_mask]
    out_ref,        # (8,)        f32 SMEM output
    acc_ref,        # (4,)        f32 SMEM scratch: [mel_abs_sum, post_abs_sum, frame_count, -]
):
    t = pl.program_id(0)
    nt = pl.num_programs(0)

    @pl.when(t == 0)
    def _init():
        acc_ref[0] = 0.0
        acc_ref[1] = 0.0
        acc_ref[2] = 0.0

    # --- streamed MAE partial sums over valid mel frames ---------------------
    mask = mask_ref[...]                               # (tile, 1) f32, clean (zero padded)
    valid = mask > 0.5                                 # (tile, 1) bool
    tgt = mel_tgt_ref[...].astype(jnp.float32)         # upcast after load (bf16-friendly)
    mel_abs = jnp.where(valid,
                        jnp.abs(mel_pred_ref[...].astype(jnp.float32) - tgt), 0.0)
    post_abs = jnp.where(valid,
                         jnp.abs(postnet_ref[...].astype(jnp.float32) - tgt), 0.0)

    acc_ref[0] = acc_ref[0] + jnp.sum(mel_abs)
    acc_ref[1] = acc_ref[1] + jnp.sum(post_abs)
    acc_ref[2] = acc_ref[2] + jnp.sum(mask)

    # --- phoneme-level losses + finalize (once, on last grid step) -----------
    @pl.when(t == nt - 1)
    def _finalize():
        n_mels = mel_pred_ref.shape[-1]

        pitch_pred = small_ref[0]
        pitch_tgt = small_ref[1]
        energy_pred = small_ref[2]
        energy_tgt = small_ref[3]
        log_dur_pred = small_ref[4]
        dur_tgt = small_ref[5]
        src_mask = small_ref[6]

        src_count = jnp.sum(src_mask)
        inv_src = 1.0 / src_count

        pd = pitch_pred - pitch_tgt
        ed = energy_pred - energy_tgt
        dd = log_dur_pred - jnp.log(dur_tgt + 1.0)
        pitch_loss = jnp.sum(pd * pd * src_mask) * inv_src
        energy_loss = jnp.sum(ed * ed * src_mask) * inv_src
        dur_loss = jnp.sum(dd * dd * src_mask) * inv_src

        mel_count = acc_ref[2] * jnp.float32(n_mels)
        inv_mel = 1.0 / mel_count
        mel_loss = acc_ref[0] * inv_mel
        postnet_loss = acc_ref[1] * inv_mel

        total = mel_loss + postnet_loss + dur_loss + pitch_loss + energy_loss
        out_ref[0] = total
        out_ref[1] = mel_loss
        out_ref[2] = postnet_loss
        out_ref[3] = pitch_loss
        out_ref[4] = energy_loss
        out_ref[5] = dur_loss
        out_ref[6] = 0.0
        out_ref[7] = 0.0


def fastspeech2_loss(
    mel_predictions,          # (B, T, M)  f32 or bf16
    postnet_mel_predictions,  # (B, T, M)
    mel_targets,              # (B, T', M) with T' >= T
    pitch_predictions,        # (B, L)
    pitch_targets,            # (B, L)
    energy_predictions,       # (B, L)
    energy_targets,           # (B, L)
    log_duration_predictions, # (B, L)
    duration_targets,         # (B, L) int
    src_masks,                # (B, L) bool, True = PADDING (PyTorch convention)
    mel_masks,                # (B, T) bool, True = PADDING (PyTorch convention)
    *,
    row_tile=1024,            # rows of the flattened (B*T, M) mel stream per block
):
    # Wrapper glue mirroring the PyTorch forward.
    src_valid = (~src_masks).astype(jnp.float32)       # src_masks = ~src_masks
    mel_valid = (~mel_masks).astype(jnp.float32)       # mel_masks = ~mel_masks
    B, T = mel_valid.shape
    M = mel_predictions.shape[-1]
    L = src_valid.shape[-1]

    mel_targets = mel_targets[:, :T, :]                # mel_targets[:, :mel_masks.shape[1], :]

    # Flatten (B, T, M) -> (B*T, M): free reshape; tile size decoupled from B.
    N = B * T
    mel_p = mel_predictions.reshape(N, M)              # keep HBM dtype (bf16 OK)
    post_p = postnet_mel_predictions.reshape(N, M)
    mel_t = mel_targets.reshape(N, M)

    if N <= row_tile:
        tile = N
        num_tiles = 1
    else:
        assert row_tile % 8 == 0, "row_tile must be a multiple of 8"
        tile = row_tile
        num_tiles = pl.cdiv(N, tile)
    n_pad = num_tiles * tile

    # Mel mask: flatten, zero-pad to the tile grid (cheap: (B*T,) f32),
    # shape (n_pad, 1) so the block shape (tile, 1) is TPU-layout legal.
    mask_flat = mel_valid.reshape(N)
    if n_pad != N:
        mask_flat = jnp.pad(mask_flat, (0, n_pad - N))
    mask_col = mask_flat.reshape(n_pad, 1)

    # Stack the seven tiny phoneme-level arrays into one input (single DMA).
    small = jnp.stack(
        [
            pitch_predictions.astype(jnp.float32),
            pitch_targets.astype(jnp.float32),
            energy_predictions.astype(jnp.float32),
            energy_targets.astype(jnp.float32),
            log_duration_predictions.astype(jnp.float32),
            duration_targets.astype(jnp.float32),
            src_valid,
        ],
        axis=0,
    )  # (7, B, L)

    mel_bytes = jnp.dtype(mel_predictions.dtype).itemsize
    cost = pl.CostEstimate(
        flops=int(8 * N * M + 12 * B * L),
        transcendentals=int(B * L),
        bytes_accessed=int(3 * N * M * mel_bytes + (n_pad + 7 * B * L + 8) * 4),
    )

    grid_spec = pltpu.PrefetchScalarGridSpec(
        num_scalar_prefetch=0,
        grid=(num_tiles,),
        in_specs=[
            pl.BlockSpec((tile, M), lambda t: (t, 0)),      # mel pred
            pl.BlockSpec((tile, M), lambda t: (t, 0)),      # postnet pred
            pl.BlockSpec((tile, M), lambda t: (t, 0)),      # mel target
            pl.BlockSpec((tile, 1), lambda t: (t, 0)),      # mel valid mask
            pl.BlockSpec((7, B, L), lambda t: (0, 0, 0)),   # phoneme pack: constant -> DMA'd once
        ],
        out_specs=pl.BlockSpec(memory_space=pltpu.SMEM),
        scratch_shapes=[pltpu.SMEM((4,), jnp.float32)],
    )

    out = pl.pallas_call(
        _fs2_loss_kernel,
        out_shape=jax.ShapeDtypeStruct((8,), jnp.float32),
        grid_spec=grid_spec,
        compiler_params=pltpu.CompilerParams(
            # Single grid axis is a reduction (accumulator) -> arbitrary.
            # TODO(synk): sharding this reduction across v7x's 2 TCs would need
            # per-core partials + a cross-core combine; not worth it for a loss.
            dimension_semantics=("arbitrary",),
        ),
        cost_estimate=cost,
    )(mel_p, post_p, mel_t, mask_col, small)

    total_loss, mel_loss, postnet_mel_loss, pitch_loss, energy_loss, duration_loss = (
        out[0], out[1], out[2], out[3], out[4], out[5]
    )
    return total_loss, mel_loss, postnet_mel_loss, pitch_loss, energy_loss, duration_loss


def _reference(mel_p, post_p, mel_t, pit_p, pit_t, en_p, en_t, ldur_p, dur_t,
               src_masks, mel_masks):
    src_valid = (~src_masks).astype(jnp.float32)
    mel_valid = (~mel_masks).astype(jnp.float32)
    mel_t = mel_t[:, :mel_valid.shape[1], :]
    m3 = mel_valid[:, :, None]
    mel_count = jnp.sum(mel_valid) * mel_p.shape[-1]
    src_count = jnp.sum(src_valid)
    mel_loss = jnp.sum(jnp.abs(mel_p - mel_t) * m3) / mel_count
    post_loss = jnp.sum(jnp.abs(post_p - mel_t) * m3) / mel_count
    pitch_loss = jnp.sum(((pit_p - pit_t) ** 2) * src_valid) / src_count
    energy_loss = jnp.sum(((en_p - en_t) ** 2) * src_valid) / src_count
    ldur_t = jnp.log(dur_t.astype(jnp.float32) + 1.0)
    dur_loss = jnp.sum(((ldur_p - ldur_t) ** 2) * src_valid) / src_count
    total = mel_loss + post_loss + dur_loss + pitch_loss + energy_loss
    return total, mel_loss, post_loss, pitch_loss, energy_loss, dur_loss


if __name__ == "__main__":
    key = jax.random.PRNGKey(0)
    B, L_src, T_mel, N_MELS = 2, 8, 20, 8

    keys = jax.random.split(key, 10)
    mel_pred = jax.random.normal(keys[0], (B, T_mel, N_MELS), jnp.float32)
    postnet_pred = jax.random.normal(keys[1], (B, T_mel, N_MELS), jnp.float32)
    mel_tgt = jax.random.normal(keys[2], (B, T_mel, N_MELS), jnp.float32)
    pitch_pred = jax.random.normal(keys[3], (B, L_src), jnp.float32)
    pitch_tgt = jax.random.normal(keys[4], (B, L_src), jnp.float32)
    energy_pred = jax.random.normal(keys[5], (B, L_src), jnp.float32)
    energy_tgt = jax.random.normal(keys[6], (B, L_src), jnp.float32)
    log_dur_pred = jax.random.normal(keys[7], (B, L_src), jnp.float32)
    duration_tgt = jax.random.randint(keys[8], (B, L_src), 0, 6, jnp.int32)

    # Padding masks (True = padded), PyTorch convention before the `~`.
    src_lens = jnp.array([8, 5], jnp.int32)
    mel_lens = jnp.array([20, 13], jnp.int32)
    src_masks = jnp.arange(L_src)[None, :] >= src_lens[:, None]   # (B, L_src) bool
    mel_masks = jnp.arange(T_mel)[None, :] >= mel_lens[:, None]   # (B, T_mel) bool

    args = (mel_pred, postnet_pred, mel_tgt,
            pitch_pred, pitch_tgt,
            energy_pred, energy_tgt,
            log_dur_pred, duration_tgt,
            src_masks, mel_masks)

    ref = _reference(mel_pred, postnet_pred, mel_tgt, pitch_pred, pitch_tgt,
                     energy_pred, energy_tgt, log_dur_pred, duration_tgt,
                     src_masks, mel_masks)

    # Default path: N = B*T = 40 <= row_tile -> single grid step.
    out_single = jax.block_until_ready(fastspeech2_loss(*args))
    # Tiled path: row_tile=16 -> 3 grid steps, padded mask, partial last mel block.
    out_tiled = jax.block_until_ready(fastspeech2_loss(*args, row_tile=16))

    for got, want in zip(out_single, ref):
        assert jnp.allclose(got, want, rtol=1e-5, atol=1e-6), ("single", got, want)
    for got, want in zip(out_tiled, ref):
        assert jnp.allclose(got, want, rtol=1e-5, atol=1e-6), ("tiled", got, want)

    print("KERNEL_OK")
</pallas_src>

<mosaic_0001>
module attributes {stable_mosaic.version = 11 : i64} {
  func.func @_fs2_loss_kernel(%arg0: i32, %arg1: memref<40x8xf32, #tpu.memory_space<vmem>>, %arg2: memref<40x8xf32, #tpu.memory_space<vmem>>, %arg3: memref<40x8xf32, #tpu.memory_space<vmem>>, %arg4: memref<40x1xf32, #tpu.memory_space<vmem>>, %arg5: memref<7x2x8xf32, #tpu.memory_space<vmem>>, %arg6: memref<8xf32, #tpu.memory_space<smem>>, %arg7: memref<4xf32, #tpu.memory_space<smem>>) attributes {dimension_semantics = [#tpu.dimension_semantics<arbitrary>], iteration_bounds = array<i64: 1>, scalar_prefetch = 0 : i64, scratch_operands = 1 : i64, tpu.core_type = #tpu.core_type<tc>, window_params = [{transform_indices = @transform_0, window_bounds = array<i64: 40, 8>}, {transform_indices = @transform_1, window_bounds = array<i64: 40, 8>}, {transform_indices = @transform_2, window_bounds = array<i64: 40, 8>}, {transform_indices = @transform_3, window_bounds = array<i64: 40, 1>}, {pipeline_mode = #tpu.pipeline_mode<synchronous>, transform_indices = @transform_4, window_bounds = array<i64: 7, 2, 8>}, {transform_indices = @transform_5, window_bounds = array<i64: 8>}]} {
    %c0_i32 = arith.constant 0 : i32
    %0 = arith.cmpi eq, %arg0, %c0_i32 : i32
    %1 = arith.extui %0 : i1 to i32
    %c0_i32_0 = arith.constant 0 : i32
    %2 = arith.cmpi ne, %1, %c0_i32_0 : i32
    scf.if %2 {
      %cst_19 = arith.constant 0.000000e+00 : f32
      %c0_20 = arith.constant 0 : index
      %45 = memref.load %arg7[%c0_20] : memref<4xf32, #tpu.memory_space<smem>>
      memref.store %cst_19, %arg7[%c0_20] : memref<4xf32, #tpu.memory_space<smem>>
      %cst_21 = arith.constant 0.000000e+00 : f32
      %c1_22 = arith.constant 1 : index
      %46 = memref.load %arg7[%c1_22] : memref<4xf32, #tpu.memory_space<smem>>
      memref.store %cst_21, %arg7[%c1_22] : memref<4xf32, #tpu.memory_space<smem>>
      %cst_23 = arith.constant 0.000000e+00 : f32
      %c2_24 = arith.constant 2 : index
      %47 = memref.load %arg7[%c2_24] : memref<4xf32, #tpu.memory_space<smem>>
      memref.store %cst_23, %arg7[%c2_24] : memref<4xf32, #tpu.memory_space<smem>>
    } else {
    }
    %c0 = arith.constant 0 : index
    %c0_1 = arith.constant 0 : index
    %3 = vector.load %arg4[%c0, %c0_1] : memref<40x1xf32, #tpu.memory_space<vmem>>, vector<40x1xf32>
    %cst = arith.constant 5.000000e-01 : f32
    %4 = vector.broadcast %cst : f32 to vector<40x1xf32>
    %5 = arith.cmpf ogt, %3, %4 : vector<40x1xf32>
    %c0_2 = arith.constant 0 : index
    %c0_3 = arith.constant 0 : index
    %6 = vector.load %arg3[%c0_2, %c0_3] : memref<40x8xf32, #tpu.memory_space<vmem>>, vector<40x8xf32>
    %c0_4 = arith.constant 0 : index
    %c0_5 = arith.constant 0 : index
    %7 = vector.load %arg1[%c0_4, %c0_5] : memref<40x8xf32, #tpu.memory_space<vmem>>, vector<40x8xf32>
    %8 = arith.subf %7, %6 : vector<40x8xf32>
    %9 = math.absf %8 : vector<40x8xf32>
    %cst_6 = arith.constant 0.000000e+00 : f32
    %10 = vector.shape_cast %5 : vector<40x1xi1> to vector<40x1xi1>
    %11 = vector.broadcast %10 : vector<40x1xi1> to vector<40x8xi1>
    %12 = vector.broadcast %cst_6 : f32 to vector<40x8xf32>
    %13 = arith.select %11, %9, %12 : vector<40x8xi1>, vector<40x8xf32>
    %c0_7 = arith.constant 0 : index
    %c0_8 = arith.constant 0 : index
    %14 = vector.load %arg2[%c0_7, %c0_8] : memref<40x8xf32, #tpu.memory_space<vmem>>, vector<40x8xf32>
    %15 = arith.subf %14, %6 : vector<40x8xf32>
    %16 = math.absf %15 : vector<40x8xf32>
    %cst_9 = arith.constant 0.000000e+00 : f32
    %17 = vector.shape_cast %5 : vector<40x1xi1> to vector<40x1xi1>
    %18 = vector.broadcast %17 : vector<40x1xi1> to vector<40x8xi1>
    %19 = vector.broadcast %cst_9 : f32 to vector<40x8xf32>
    %20 = arith.select %18, %16, %19 : vector<40x8xi1>, vector<40x8xf32>
    %c0_10 = arith.constant 0 : index
    %21 = memref.load %arg7[%c0_10] : memref<4xf32, #tpu.memory_space<smem>>
    %22 = vector.shape_cast %13 : vector<40x8xf32> to vector<1x40x8xf32>
    %cst_11 = arith.constant dense<0.000000e+00> : vector<1xf32>
    %23 = vector.multi_reduction <add>, %22, %cst_11 [1, 2] : vector<1x40x8xf32> to vector<1xf32>
    %24 = vector.shape_cast %23 : vector<1xf32> to vector<1x1x1xf32>
    %25 = vector.extract %24[0, 0, 0] : f32 from vector<1x1x1xf32>
    %26 = arith.addf %21, %25 : f32
    %c0_12 = arith.constant 0 : index
    %27 = memref.load %arg7[%c0_12] : memref<4xf32, #tpu.memory_space<smem>>
    memref.store %26, %arg7[%c0_12] : memref<4xf32, #tpu.memory_space<smem>>
    %c1 = arith.constant 1 : index
    %28 = memref.load %arg7[%c1] : memref<4xf32, #tpu.memory_space<smem>>
    %29 = vector.shape_cast %20 : vector<40x8xf32> to vector<1x40x8xf32>
    %cst_13 = arith.constant dense<0.000000e+00> : vector<1xf32>
    %30 = vector.multi_reduction <add>, %29, %cst_13 [1, 2] : vector<1x40x8xf32> to vector<1xf32>
    %31 = vector.shape_cast %30 : vector<1xf32> to vector<1x1x1xf32>
    %32 = vector.extract %31[0, 0, 0] : f32 from vector<1x1x1xf32>
    %33 = arith.addf %28, %32 : f32
    %c1_14 = arith.constant 1 : index
    %34 = memref.load %arg7[%c1_14] : memref<4xf32, #tpu.memory_space<smem>>
    memref.store %33, %arg7[%c1_14] : memref<4xf32, #tpu.memory_space<smem>>
    %c2 = arith.constant 2 : index
    %35 = memref.load %arg7[%c2] : memref<4xf32, #tpu.memory_space<smem>>
    %36 = vector.shape_cast %3 : vector<40x1xf32> to vector<1x40x1xf32>
    %cst_15 = arith.constant dense<0.000000e+00> : vector<1xf32>
    %37 = vector.multi_reduction <add>, %36, %cst_15 [1, 2] : vector<1x40x1xf32> to vector<1xf32>
    %38 = vector.shape_cast %37 : vector<1xf32> to vector<1x1x1xf32>
    %39 = vector.extract %38[0, 0, 0] : f32 from vector<1x1x1xf32>
    %40 = arith.addf %35, %39 : f32
    %c2_16 = arith.constant 2 : index
    %41 = memref.load %arg7[%c2_16] : memref<4xf32, #tpu.memory_space<smem>>
    memref.store %40, %arg7[%c2_16] : memref<4xf32, #tpu.memory_space<smem>>
    %c0_i32_17 = arith.constant 0 : i32
    %42 = arith.cmpi eq, %arg0, %c0_i32_17 : i32
    %43 = arith.extui %42 : i1 to i32
    %c0_i32_18 = arith.constant 0 : i32
    %44 = arith.cmpi ne, %43, %c0_i32_18 : i32
    scf.if %44 {
      %c0_19 = arith.constant 0 : index
      %c0_20 = arith.constant 0 : index
      %c0_21 = arith.constant 0 : index
      %45 = vector.load %arg5[%c0_19, %c0_20, %c0_21] : memref<7x2x8xf32, #tpu.memory_space<vmem>>, vector<1x2x8xf32>
      %46 = vector.shape_cast %45 : vector<1x2x8xf32> to vector<2x8xf32>
      %c1_22 = arith.constant 1 : index
      %c0_23 = arith.constant 0 : index
      %c0_24 = arith.constant 0 : index
      %47 = vector.load %arg5[%c1_22, %c0_23, %c0_24] : memref<7x2x8xf32, #tpu.memory_space<vmem>>, vector<1x2x8xf32>
      %48 = vector.shape_cast %47 : vector<1x2x8xf32> to vector<2x8xf32>
      %c2_25 = arith.constant 2 : index
      %c0_26 = arith.constant 0 : index
      %c0_27 = arith.constant 0 : index
      %49 = vector.load %arg5[%c2_25, %c0_26, %c0_27] : memref<7x2x8xf32, #tpu.memory_space<vmem>>, vector<1x2x8xf32>
      %50 = vector.shape_cast %49 : vector<1x2x8xf32> to vector<2x8xf32>
      %c3 = arith.constant 3 : index
      %c0_28 = arith.constant 0 : index
      %c0_29 = arith.constant 0 : index
      %51 = vector.load %arg5[%c3, %c0_28, %c0_29] : memref<7x2x8xf32, #tpu.memory_space<vmem>>, vector<1x2x8xf32>
      %52 = vector.shape_cast %51 : vector<1x2x8xf32> to vector<2x8xf32>
      %c4 = arith.constant 4 : index
      %c0_30 = arith.constant 0 : index
      %c0_31 = arith.constant 0 : index
      %53 = vector.load %arg5[%c4, %c0_30, %c0_31] : memref<7x2x8xf32, #tpu.memory_space<vmem>>, vector<1x2x8xf32>
      %54 = vector.shape_cast %53 : vector<1x2x8xf32> to vector<2x8xf32>
      %c5 = arith.constant 5 : index
      %c0_32 = arith.constant 0 : index
      %c0_33 = arith.constant 0 : index
      %55 = vector.load %arg5[%c5, %c0_32, %c0_33] : memref<7x2x8xf32, #tpu.memory_space<vmem>>, vector<1x2x8xf32>
      %56 = vector.shape_cast %55 : vector<1x2x8xf32> to vector<2x8xf32>
      %c6 = arith.constant 6 : index
      %c0_34 = arith.constant 0 : index
      %c0_35 = arith.constant 0 : index
      %57 = vector.load %arg5[%c6, %c0_34, %c0_35] : memref<7x2x8xf32, #tpu.memory_space<vmem>>, vector<1x2x8xf32>
      %58 = vector.shape_cast %57 : vector<1x2x8xf32> to vector<2x8xf32>
      %59 = vector.shape_cast %58 : vector<2x8xf32> to vector<1x2x8xf32>
      %cst_36 = arith.constant dense<0.000000e+00> : vector<1xf32>
      %60 = vector.multi_reduction <add>, %59, %cst_36 [1, 2] : vector<1x2x8xf32> to vector<1xf32>
      %61 = vector.shape_cast %60 : vector<1xf32> to vector<1x1x1xf32>
      %62 = vector.extract %61[0, 0, 0] : f32 from vector<1x1x1xf32>
      %cst_37 = arith.constant 1.000000e+00 : f32
      %63 = arith.divf %cst_37, %62 : f32
      %64 = arith.subf %46, %48 : vector<2x8xf32>
      %65 = arith.subf %50, %52 : vector<2x8xf32>
      %cst_38 = arith.constant 1.000000e+00 : f32
      %66 = vector.broadcast %cst_38 : f32 to vector<2x8xf32>
      %67 = arith.addf %56, %66 : vector<2x8xf32>
      %68 = math.log %67 : vector<2x8xf32>
      %69 = arith.subf %54, %68 : vector<2x8xf32>
      %70 = arith.mulf %64, %64 : vector<2x8xf32>
      %71 = arith.mulf %70, %58 : vector<2x8xf32>
      %72 = vector.shape_cast %71 : vector<2x8xf32> to vector<1x2x8xf32>
      %cst_39 = arith.constant dense<0.000000e+00> : vector<1xf32>
      %73 = vector.multi_reduction <add>, %72, %cst_39 [1, 2] : vector<1x2x8xf32> to vector<1xf32>
      %74 = vector.shape_cast %73 : vector<1xf32> to vector<1x1x1xf32>
      %75 = vector.extract %74[0, 0, 0] : f32 from vector<1x1x1xf32>
      %76 = arith.mulf %75, %63 : f32
      %77 = arith.mulf %65, %65 : vector<2x8xf32>
      %78 = arith.mulf %77, %58 : vector<2x8xf32>
      %79 = vector.shape_cast %78 : vector<2x8xf32> to vector<1x2x8xf32>
      %cst_40 = arith.constant dense<0.000000e+00> : vector<1xf32>
      %80 = vector.multi_reduction <add>, %79, %cst_40 [1, 2] : vector<1x2x8xf32> to vector<1xf32>
      %81 = vector.shape_cast %80 : vector<1xf32> to vector<1x1x1xf32>
      %82 = vector.extract %81[0, 0, 0] : f32 from vector<1x1x1xf32>
      %83 = arith.mulf %82, %63 : f32
      %84 = arith.mulf %69, %69 : vector<2x8xf32>
      %85 = arith.mulf %84, %58 : vector<2x8xf32>
      %86 = vector.shape_cast %85 : vector<2x8xf32> to vector<1x2x8xf32>
      %cst_41 = arith.constant dense<0.000000e+00> : vector<1xf32>
      %87 = vector.multi_reduction <add>, %86, %cst_41 [1, 2] : vector<1x2x8xf32> to vector<1xf32>
      %88 = vector.shape_cast %87 : vector<1xf32> to vector<1x1x1xf32>
      %89 = vector.extract %88[0, 0, 0] : f32 from vector<1x1x1xf32>
      %90 = arith.mulf %89, %63 : f32
      %c2_42 = arith.constant 2 : index
      %91 = memref.load %arg7[%c2_42] : memref<4xf32, #tpu.memory_space<smem>>
      %cst_43 = arith.constant 8.000000e+00 : f32
      %92 = arith.mulf %91, %cst_43 : f32
      %cst_44 = arith.constant 1.000000e+00 : f32
      %93 = arith.divf %cst_44, %92 : f32
      %c0_45 = arith.constant 0 : index
      %94 = memref.load %arg7[%c0_45] : memref<4xf32, #tpu.memory_space<smem>>
      %95 = arith.mulf %94, %93 : f32
      %c1_46 = arith.constant 1 : index
      %96 = memref.load %arg7[%c1_46] : memref<4xf32, #tpu.memory_space<smem>>
      %97 = arith.mulf %96, %93 : f32
      %98 = arith.addf %95, %97 : f32
      %99 = arith.addf %98, %90 : f32
      %100 = arith.addf %99, %76 : f32
      %101 = arith.addf %100, %83 : f32
      %c0_47 = arith.constant 0 : index
      %102 = memref.load %arg6[%c0_47] : memref<8xf32, #tpu.memory_space<smem>>
      memref.store %101, %arg6[%c0_47] : memref<8xf32, #tpu.memory_space<smem>>
      %c1_48 = arith.constant 1 : index
      %103 = memref.load %arg6[%c1_48] : memref<8xf32, #tpu.memory_space<smem>>
      memref.store %95, %arg6[%c1_48] : memref<8xf32, #tpu.memory_space<smem>>
      %c2_49 = arith.constant 2 : index
      %104 = memref.load %arg6[%c2_49] : memref<8xf32, #tpu.memory_space<smem>>
      memref.store %97, %arg6[%c2_49] : memref<8xf32, #tpu.memory_space<smem>>
      %c3_50 = arith.constant 3 : index
      %105 = memref.load %arg6[%c3_50] : memref<8xf32, #tpu.memory_space<smem>>
      memref.store %76, %arg6[%c3_50] : memref<8xf32, #tpu.memory_space<smem>>
      %c4_51 = arith.constant 4 : index
      %106 = memref.load %arg6[%c4_51] : memref<8xf32, #tpu.memory_space<smem>>
      memref.store %83, %arg6[%c4_51] : memref<8xf32, #tpu.memory_space<smem>>
      %c5_52 = arith.constant 5 : index
      %107 = memref.load %arg6[%c5_52] : memref<8xf32, #tpu.memory_space<smem>>
      memref.store %90, %arg6[%c5_52] : memref<8xf32, #tpu.memory_space<smem>>
      %cst_53 = arith.constant 0.000000e+00 : f32
      %c6_54 = arith.constant 6 : index
      %108 = memref.load %arg6[%c6_54] : memref<8xf32, #tpu.memory_space<smem>>
      memref.store %cst_53, %arg6[%c6_54] : memref<8xf32, #tpu.memory_space<smem>>
      %cst_55 = arith.constant 0.000000e+00 : f32
      %c7 = arith.constant 7 : index
      %109 = memref.load %arg6[%c7] : memref<8xf32, #tpu.memory_space<smem>>
      memref.store %cst_55, %arg6[%c7] : memref<8xf32, #tpu.memory_space<smem>>
    } else {
    }
    return
  }
  func.func @transform_0(%arg0: i32) -> (i32, i32) {
    %c0_i32 = arith.constant 0 : i32
    %c0_i32_0 = arith.constant 0 : i32
    return %arg0, %c0_i32 : i32, i32
  }
  func.func @transform_1(%arg0: i32) -> (i32, i32) {
    %c0_i32 = arith.constant 0 : i32
    %c0_i32_0 = arith.constant 0 : i32
    return %arg0, %c0_i32 : i32, i32
  }
  func.func @transform_2(%arg0: i32) -> (i32, i32) {
    %c0_i32 = arith.constant 0 : i32
    %c0_i32_0 = arith.constant 0 : i32
    return %arg0, %c0_i32 : i32, i32
  }
  func.func @transform_3(%arg0: i32) -> (i32, i32) {
    %c0_i32 = arith.constant 0 : i32
    %c0_i32_0 = arith.constant 0 : i32
    return %arg0, %c0_i32 : i32, i32
  }
  func.func @transform_4(%arg0: i32) -> (i32, i32, i32) {
    %c0_i32 = arith.constant 0 : i32
    %c0_i32_0 = arith.constant 0 : i32
    %c0_i32_1 = arith.constant 0 : i32
    %c0_i32_2 = arith.constant 0 : i32
    return %c0_i32, %c0_i32_0, %c0_i32_1 : i32, i32, i32
  }
  func.func @transform_5(%arg0: i32) -> i32 {
    %c0_i32 = arith.constant 0 : i32
    %c0_i32_0 = arith.constant 0 : i32
    return %c0_i32 : i32
  }
}

</mosaic_0001>

<llo_original>
// kernel: tpu_custom_call.1
$region0: #{tpu_custom_call.1}
  #allocation0 [shape = 'u32[]', space=smem, size = 0x4, offset = 0x4, fixed_abs, tag = 'smem constant byte address 0x4 - core index']
  #allocation1 [shape = 'u32[144,128]{1,0:T(1,128)}', space=vmem, size = 0x12000, scoped, tag = 'internal scratch']
  #allocation2 [shape = 'f32[4]{0:T(128)}', space=smem, size = 0x200, scoped, tag = 'scratch operand']
  %s0 = inlined_call_operand.vmem [shape: f32[40,8], index: 0, kind: input, shape index: {}]
  %s1 = inlined_call_operand.vmem [shape: f32[40,8], index: 1, kind: input, shape index: {}]
  %s2 = inlined_call_operand.vmem [shape: f32[40,8], index: 2, kind: input, shape index: {}]
  %s3 = inlined_call_operand.vmem [shape: f32[40,1], index: 3, kind: input, shape index: {}]
  %s4 = inlined_call_operand.vmem [shape: f32[7,2,8], index: 4, kind: input, shape index: {}]
  %s5 = inlined_call_operand.hbm [shape: f32[8], index: 5, kind: output, shape index: {}]
  %s6 = sld [smem:[#allocation0]]
  $region38: #{tpu_custom_call.1} parent=0
    _
  %s8 = ssub.s32 1, %s6
  %s9 = scalar_select 0, %s8, %s6
  $region1: #{tpu_custom_call.1} parent=0
    #allocation3 [shape = 'u8[512]{0}', space=smem, size = 0x200, scoped, tag = 'output window, operand 0, single buffered']
    #allocation4 [shape = 's32[1]{0}', space=sflag, size = 0x4, scoped, tag = 'scoped memory for tpu_custom_call.1']
    %10 = vsyncpa [#allocation4], 0
    // Predicated region
    $region2: #{tpu_custom_call.1} parent=1 // pred_check
      _
    $region3: #{tpu_custom_call.1} parent=1 // pred_check_branch
      %12 = sbr.rel (0) target = $region5
    $region4: #{tpu_custom_call.1} parent=1 // pred_region
      _
    $region5: #{tpu_custom_call.1} parent=1 // pred_fallthru
      _
    // Predicated region
    $region6: #{tpu_custom_call.1} parent=1 // pred_check
      _
    $region7: #{tpu_custom_call.1} parent=1 // pred_check_branch
      %14 = sbr.rel (0) target = $region9
    $region8: #{tpu_custom_call.1} parent=1 // pred_region
      _
    $region9: #{tpu_custom_call.1} parent=1 // pred_fallthru
      _
    // Predicated region
    $region10: #{tpu_custom_call.1} parent=1 // pred_check
      _
    $region11: #{tpu_custom_call.1} parent=1 // pred_check_branch
      %16 = sbr.rel (0) target = $region13
    $region12: #{tpu_custom_call.1} parent=1 // pred_region
      _
    $region13: #{tpu_custom_call.1} parent=1 // pred_fallthru
      _
    // Predicated region
    $region14: #{tpu_custom_call.1} parent=1 // pred_check
      _
    $region15: #{tpu_custom_call.1} parent=1 // pred_check_branch
      %18 = sbr.rel (0) target = $region17
    $region16: #{tpu_custom_call.1} parent=1 // pred_region
      _
    $region17: #{tpu_custom_call.1} parent=1 // pred_fallthru
      _
    // Predicated region
    $region18: #{tpu_custom_call.1} parent=1 // pred_check
      _
    $region19: #{tpu_custom_call.1} parent=1 // pred_check_branch
      %20 = sbr.rel (0) target = $region21
    $region20: #{tpu_custom_call.1} parent=1 // pred_region
      _
    $region21: #{tpu_custom_call.1} parent=1 // pred_fallthru
      _
    %p21 = scmp.eq.s32.totalorder 0, 0
    // Predicated region
    $region22: #{tpu_custom_call.1} parent=1 // pred_check
      %p22 = pneg %p21
    $region23: #{tpu_custom_call.1} parent=1 // pred_check_branch
      %24 = sbr.rel (%p22) target = $region25
    $region24: #{tpu_custom_call.1} parent=1 // pred_region
      %s25 = scalar_lea.smem [#allocation2], 0
      %26 = sst [smem:[%s25]] 0.0
      %s27 = scalar_lea.smem [#allocation2], 1
      %28 = sst [smem:[%s27]] 0.0
      %s29 = scalar_lea.smem [#allocation2], 2
      %30 = sst [smem:[%s29]] 0.0
    $region25: #{tpu_custom_call.1} parent=1 // pred_fallthru
      _
    %v31 = vld [vmem:[%s3] sm:$0xff]
    %v32 = vld [vmem:[%s3 + $0x8] sm:$0xff]
    %v33 = vld [vmem:[%s3 + $0x10] sm:$0xff]
    %v34 = vld [vmem:[%s3 + $0x18] sm:$0xff]
    %v35 = vld [vmem:[%s3 + $0x20] sm:$0xff]
    %vm36 = vcmp.gt.f32.partialorder %v31, 0.5
    %vm37 = vcmp.gt.f32.partialorder %v32, 0.5
    %vm38 = vcmp.gt.f32.partialorder %v33, 0.5
    %vm39 = vcmp.gt.f32.partialorder %v34, 0.5
    %vm40 = vcmp.gt.f32.partialorder %v35, 0.5
    %v41 = vld [vmem:[%s2] sm:$0xff]
    %v42 = vld [vmem:[%s2 + $0x8] sm:$0xff]
    %v43 = vld [vmem:[%s2 + $0x10] sm:$0xff]
    %v44 = vld [vmem:[%s2 + $0x18] sm:$0xff]
    %v45 = vld [vmem:[%s2 + $0x20] sm:$0xff]
    %v46 = vld [vmem:[%s0] sm:$0xff]
    %v47 = vld [vmem:[%s0 + $0x8] sm:$0xff]
    %v48 = vld [vmem:[%s0 + $0x10] sm:$0xff]
    %v49 = vld [vmem:[%s0 + $0x18] sm:$0xff]
    %v50 = vld [vmem:[%s0 + $0x20] sm:$0xff]
    %v51 = vsub.f32 %v46, %v41
    %v52 = vsub.f32 %v47, %v42
    %v53 = vsub.f32 %v48, %v43
    %v54 = vsub.f32 %v49, %v44
    %v55 = vsub.f32 %v50, %v45
    %v56 = vand.u32 2147483647, %v51
    %v57 = vand.u32 2147483647, %v52
    %v58 = vand.u32 2147483647, %v53
    %v59 = vand.u32 2147483647, %v54
    %v60 = vand.u32 2147483647, %v55
    %v61 = vsel %vm36, 1, 0
    %v62 = vsel %vm37, 1, 0
    %v63 = vsel %vm38, 1, 0
    %v64 = vsel %vm39, 1, 0
    %v65 = vsel %vm40, 1, 0
    %66 = vset.pattern.permute.xlu0 0
    %67 = vperm.xlu0 %66, %v61
    %v68 = vpop.permute.xlu0 %67
    %69 = vset.pattern.permute.xlu0 0
    %70 = vperm.xlu0 %69, %v62
    %v71 = vpop.permute.xlu0 %70
    %72 = vset.pattern.permute.xlu0 0
    %73 = vperm.xlu0 %72, %v63
    %v74 = vpop.permute.xlu0 %73
    %75 = vset.pattern.permute.xlu0 0
    %76 = vperm.xlu0 %75, %v64
    %v77 = vpop.permute.xlu0 %76
    %78 = vset.pattern.permute.xlu0 0
    %79 = vperm.xlu0 %78, %v65
    %v80 = vpop.permute.xlu0 %79
    %vm81 = vcmp.eq.s32.totalorder %v68, 1
    %vm82 = vcmp.eq.s32.totalorder %v71, 1
    %vm83 = vcmp.eq.s32.totalorder %v74, 1
    %vm84 = vcmp.eq.s32.totalorder %v77, 1
    %vm85 = vcmp.eq.s32.totalorder %v80, 1
    %v86 = vsel %vm81, %v56, 0.0
    %v87 = vsel %vm82, %v57, 0.0
    %v88 = vsel %vm83, %v58, 0.0
    %v89 = vsel %vm84, %v59, 0.0
    %v90 = vsel %vm85, %v60, 0.0
    %v91 = vld [vmem:[%s1] sm:$0xff]
    %v92 = vld [vmem:[%s1 + $0x8] sm:$0xff]
    %v93 = vld [vmem:[%s1 + $0x10] sm:$0xff]
    %v94 = vld [vmem:[%s1 + $0x18] sm:$0xff]
    %v95 = vld [vmem:[%s1 + $0x20] sm:$0xff]
    %v96 = vsub.f32 %v91, %v41
    %v97 = vsub.f32 %v92, %v42
    %v98 = vsub.f32 %v93, %v43
    %v99 = vsub.f32 %v94, %v44
    %v100 = vsub.f32 %v95, %v45
    %v101 = vand.u32 2147483647, %v96
    %v102 = vand.u32 2147483647, %v97
    %v103 = vand.u32 2147483647, %v98
    %v104 = vand.u32 2147483647, %v99
    %v105 = vand.u32 2147483647, %v100
    %v106 = vsel %vm81, %v101, 0.0
    %v107 = vsel %vm82, %v102, 0.0
    %v108 = vsel %vm83, %v103, 0.0
    %v109 = vsel %vm84, %v104, 0.0
    %v110 = vsel %vm85, %v105, 0.0
    %s111 = sld [smem:[#allocation2]]
    %vm112 = vcmask 64512
    %v113 = vsel %vm112, %v86, 0.0
    %v114 = vsel %vm112, %v87, 0.0
    %v115 = vadd.f32 %v113, %v114
    %v116 = vsel %vm112, %v88, 0.0
    %v117 = vadd.f32 %v115, %v116
    %v118 = vsel %vm112, %v89, 0.0
    %v119 = vadd.f32 %v117, %v118
    %v120 = vsel %vm112, %v90, 0.0
    %v121 = vadd.f32 %v119, %v120
    %122 = vadd.xlane.f32.xlu0 %v121
    %v123 = vpop.xlane.xlu0 %122
    %v124 = vrot.slane %v123, 4
    %v125 = vadd.f32 %v123, %v124
    %v126 = vrot.slane %v125, 2
    %v127 = vadd.f32 %v125, %v126
    %v128 = vrot.slane %v127, 1
    %v129 = vadd.f32 %v127, %v128
    %s130 = vtos %v129
    %s131 = sadd.f32 %s111, %s130
    %s132 = scalar_lea.smem [#allocation2], 0
    %133 = sst [smem:[%s132]] %s131
    %s134 = sld [smem:[#allocation2 + $0x1]]
    %v135 = vsel %vm112, %v106, 0.0
    %v136 = vsel %vm112, %v107, 0.0
    %v137 = vadd.f32 %v135, %v136
    %v138 = vsel %vm112, %v108, 0.0
    %v139 = vadd.f32 %v137, %v138
    %v140 = vsel %vm112, %v109, 0.0
    %v141 = vadd.f32 %v139, %v140
    %v142 = vsel %vm112, %v110, 0.0
    %v143 = vadd.f32 %v141, %v142
    %144 = vadd.xlane.f32.xlu0 %v143
    %v145 = vpop.xlane.xlu0 %144
    %v146 = vrot.slane %v145, 4
    %v147 = vadd.f32 %v145, %v146
    %v148 = vrot.slane %v147, 2
    %v149 = vadd.f32 %v147, %v148
    %v150 = vrot.slane %v149, 1
    %v151 = vadd.f32 %v149, %v150
    %s152 = vtos %v151
    %s153 = sadd.f32 %s134, %s152
    %s154 = scalar_lea.smem [#allocation2], 1
    %155 = sst [smem:[%s154]] %s153
    %s156 = sld [smem:[#allocation2 + $0x2]]
    %vm157 = vcmask 7168
    %v158 = vsel %vm157, %v31, 0.0
    %v159 = vsel %vm157, %v32, 0.0
    %v160 = vadd.f32 %v158, %v159
    %v161 = vsel %vm157, %v33, 0.0
    %v162 = vadd.f32 %v160, %v161
    %v163 = vsel %vm157, %v34, 0.0
    %v164 = vadd.f32 %v162, %v163
    %v165 = vsel %vm157, %v35, 0.0
    %v166 = vadd.f32 %v164, %v165
    %167 = vadd.xlane.f32.xlu0 %v166
    %v168 = vpop.xlane.xlu0 %167
    %v169 = vrot.slane %v168, 4
    %v170 = vadd.f32 %v168, %v169
    %v171 = vrot.slane %v170, 2
    %v172 = vadd.f32 %v170, %v171
    %v173 = vrot.slane %v172, 1
    %v174 = vadd.f32 %v172, %v173
    %s175 = vtos %v174
    %s176 = sadd.f32 %s156, %s175
    %s177 = scalar_lea.smem [#allocation2], 2
    %178 = sst [smem:[%s177]] %s176
    // Predicated region
    $region26: #{tpu_custom_call.1} parent=1 // pred_check
      %p179 = pneg %p21
    $region27: #{tpu_custom_call.1} parent=1 // pred_check_branch
      %181 = sbr.rel (%p179) target = $region29
    $region28: #{tpu_custom_call.1} parent=1 // pred_region
      %v182 = vld [vmem:[%s4] sm:$0x3]
      %s183 = scalar_lea.vmem %s4, 2
      %v184 = vld [vmem:[%s183] sm:$0x3]
      %s185 = scalar_lea.vmem %s4, 4
      %v186 = vld [vmem:[%s185] sm:$0x3]
      %s187 = scalar_lea.vmem %s4, 6
      %v188 = vld [vmem:[%s187] sm:$0x3]
      %s189 = scalar_lea.vmem %s4, 8
      %v190 = vld [vmem:[%s189] sm:$0x3]
      %s191 = scalar_lea.vmem %s4, 10
      %v192 = vld [vmem:[%s191] sm:$0x3]
      %s193 = scalar_lea.vmem %s4, 12
      %v194 = vld [vmem:[%s193] sm:$0x3]
      %vm195 = vcmask 58368
      %v196 = vsel %vm195, %v194, 0.0
      %197 = vadd.xlane.f32.xlu0 %v196
      %v198 = vpop.xlane.xlu0 %197
      %v199 = vrot.slane %v198, 4
      %v200 = vadd.f32 %v198, %v199
      %v201 = vrot.slane %v200, 2
      %v202 = vadd.f32 %v200, %v201
      %v203 = vrot.slane %v202, 1
      %v204 = vadd.f32 %v202, %v203
      %s205 = vtos %v204
      %v206 = vstv %s205
      %v207 = vrcp.pop %v206
      %s208 = vtos %v207
      %v209 = vsub.f32 %v182, %v184
      %v210 = vsub.f32 %v186, %v188
      %v211 = vadd.f32 %v192, 1.0
      %v212 = vlog2.pop %v211
      %v213 = vmul.f32 %v212, 0.6931472
      %v214 = vsub.f32 %v190, %v213
      %v215 = vmul.f32 %v209, %v209
      %v216 = vmul.f32 %v215, %v194
      %v217 = vsel %vm195, %v216, 0.0
      %218 = vadd.xlane.f32.xlu0 %v217
      %v219 = vpop.xlane.xlu0 %218
      %v220 = vrot.slane %v219, 4
      %v221 = vadd.f32 %v219, %v220
      %v222 = vrot.slane %v221, 2
      %v223 = vadd.f32 %v221, %v222
      %v224 = vrot.slane %v223, 1
      %v225 = vadd.f32 %v223, %v224
      %s226 = vtos %v225
      %s227 = smul.f32 %s226, %s208
      %v228 = vmul.f32 %v210, %v210
      %v229 = vmul.f32 %v228, %v194
      %v230 = vsel %vm195, %v229, 0.0
      %231 = vadd.xlane.f32.xlu0 %v230
      %v232 = vpop.xlane.xlu0 %231
      %v233 = vrot.slane %v232, 4
      %v234 = vadd.f32 %v232, %v233
      %v235 = vrot.slane %v234, 2
      %v236 = vadd.f32 %v234, %v235
      %v237 = vrot.slane %v236, 1
      %v238 = vadd.f32 %v236, %v237
      %s239 = vtos %v238
      %s240 = smul.f32 %s239, %s208
      %v241 = vmul.f32 %v214, %v214
      %v242 = vmul.f32 %v241, %v194
      %v243 = vsel %vm195, %v242, 0.0
      %244 = vadd.xlane.f32.xlu0 %v243
      %v245 = vpop.xlane.xlu0 %244
      %v246 = vrot.slane %v245, 4
      %v247 = vadd.f32 %v245, %v246
      %v248 = vrot.slane %v247, 2
      %v249 = vadd.f32 %v247, %v248
      %v250 = vrot.slane %v249, 1
      %v251 = vadd.f32 %v249, %v250
      %s252 = vtos %v251
      %s253 = smul.f32 %s252, %s208
      %s254 = sld [smem:[#allocation2 + $0x2]]
      %s255 = smul.f32 %s254, 8.0
      %v256 = vstv %s255
      %v257 = vrcp.pop %v256
      %s258 = vtos %v257
      %s259 = sld [smem:[#allocation2]]
      %s260 = smul.f32 %s259, %s258
      %s261 = sld [smem:[#allocation2 + $0x1]]
      %s262 = smul.f32 %s261, %s258
      %s263 = sadd.f32 %s260, %s262
      %s264 = sadd.f32 %s263, %s253
      %s265 = sadd.f32 %s264, %s227
      %s266 = sadd.f32 %s265, %s240
      %s267 = scalar_lea.smem [#allocation3], 0
      %268 = sst [smem:[%s267]] %s266
      %s269 = scalar_lea.smem [#allocation3], 1
      %270 = sst [smem:[%s269]] %s260
      %s271 = scalar_lea.smem [#allocation3], 2
      %272 = sst [smem:[%s271]] %s262
      %s273 = scalar_lea.smem [#allocation3], 3
      %274 = sst [smem:[%s273]] %s227
      %s275 = scalar_lea.smem [#allocation3], 4
      %276 = sst [smem:[%s275]] %s240
      %s277 = scalar_lea.smem [#allocation3], 5
      %278 = sst [smem:[%s277]] %s253
      %s279 = scalar_lea.smem [#allocation3], 6
      %280 = sst [smem:[%s279]] 0.0
      %s281 = scalar_lea.smem [#allocation3], 7
      %282 = sst [smem:[%s281]] 0.0
    $region29: #{tpu_custom_call.1} parent=1 // pred_fallthru
      _
    // Predicated region
    $region30: #{tpu_custom_call.1} parent=1 // pred_check
      _
    $region31: #{tpu_custom_call.1} parent=1 // pred_check_branch
      %284 = sbr.rel (0) target = $region33
    $region32: #{tpu_custom_call.1} parent=1 // pred_region
      %s286 = ssub.s32 16, 16
      %287 = vsyncadd [#allocation4], %s286
      %290 = dma.smem_to_hbm [#allocation3], 16, %s5, [#allocation4]
    $region33: #{tpu_custom_call.1} parent=1 // pred_fallthru
      _
    // Predicated region
    $region34: #{tpu_custom_call.1} parent=1 // pred_check
      _
    $region35: #{tpu_custom_call.1} parent=1 // pred_check_branch
      %292 = sbr.rel (0) target = $region37
    $region36: #{tpu_custom_call.1} parent=1 // pred_region
      %293 = dma.done [#allocation4], 16
    $region37: #{tpu_custom_call.1} parent=1 // pred_fallthru
      _
    %294 = sfence
    %295 = vsyncpa [#allocation4], 1

</llo_original>
